<compile_context>
chip_gen: v6e
topology: v6e:2x2x1
jax: 0.10.0
libtpu: 0.0.40
codegen_flags: <defaults>
</compile_context>

<pallas_src>
import functools

import jax
import jax.numpy as jnp
from jax.experimental import pallas as pl
from jax.experimental.pallas import tpu as pltpu


def _link_mlp_kernel(x_ref, w1_ref, w2_ref, w3_ref, w4_ref, w5_ref, b_ref, out_ref):
    """Fused 5-layer MLP, edges-on-lanes (feature-major) layout.

    x_ref:  (T, 2D) bf16 edge-major tile of concatenated [z[row] | z[col]].
    wK_ref: transposed weights (out_f, in_f); w1..w4 bf16, w5 f32.
    b_ref:  (5D+1, 1) f32 packed biases [b1 | b2 | b3 | b4 | b5].
    out_ref:(1, T) f32 sigmoid link scores (lane-dense).
    """
    d2 = w1_ref.shape[0]          # 2 * input_dim
    d = w2_ref.shape[0]           # input_dim

    # Packed biases sliced at static offsets.
    b1 = b_ref[0:d2, :]
    b2 = b_ref[d2:d2 + d, :]
    b3 = b_ref[d2 + d:d2 + 2 * d, :]
    b4 = b_ref[d2 + 2 * d:d2 + 3 * d, :]
    b5 = b_ref[d2 + 3 * d:d2 + 3 * d + 1, :]

    # Edge-major (T, 2D) -> feature-major (2D, T): one XLU transpose per tile.
    xt = x_ref[...].T

    # fc1..fc4: bf16 MXU matmuls with f32 accumulation; bias + ReLU in f32.
    h = jnp.dot(w1_ref[...], xt, preferred_element_type=jnp.float32) + b1
    h = jnp.maximum(h, 0.0)
    h = jnp.dot(w2_ref[...], h.astype(jnp.bfloat16),
                preferred_element_type=jnp.float32) + b2
    h = jnp.maximum(h, 0.0)
    h = jnp.dot(w3_ref[...], h.astype(jnp.bfloat16),
                preferred_element_type=jnp.float32) + b3
    h = jnp.maximum(h, 0.0)
    h = jnp.dot(w4_ref[...], h.astype(jnp.bfloat16),
                preferred_element_type=jnp.float32) + b4
    h = jnp.maximum(h, 0.0)

    # fc5 (out_features == 1): VPU multiply + sublane reduce -> (1, T).
    logits = jnp.sum(h * w5_ref[...], axis=0, keepdims=True) + b5
    out_ref[...] = jax.nn.sigmoid(logits).astype(out_ref.dtype)


def _const_spec(shape):
    # Same (weight/bias) block every grid step -> stays VMEM-resident.
    return pl.BlockSpec(shape, lambda i: (0, 0))


@functools.partial(jax.jit, static_argnames=("edge_tile",))
def link_predictor_forward(z, edge_index, params, *, edge_tile=1024):
    """Pallas implementation of LinkPredictor.forward (eval mode).

    z:          (N, D) float32 node embeddings
    edge_index: (2, E) int32
    params:     dict of w1..w5 stored (in_features, out_features) and
                b1..b5 stored (1, out_features), float32
    returns:    (E, 1) float32 sigmoid link scores
    """
    assert edge_tile % 128 == 0, "edge_tile must be a multiple of 128"
    N, D = z.shape
    E = edge_index.shape[1]
    D2 = 2 * D

    # Tile choice: large tiles amortize the ~0.35us/step fixed overhead; for
    # small E shrink so the "parallel" grid keeps >= 2 steps (v7x has 2 TCs).
    tile = edge_tile
    if E <= tile:
        tile = max(128, pl.cdiv(pl.cdiv(E, 2), 128) * 128)
    E_pad = pl.cdiv(E, tile) * tile

    # Pad the *indices* (cheap) instead of the gathered features, then one bf16
    # gather lands directly in the concatenated edge-major layout in HBM.
    idx = edge_index.astype(jnp.int32)
    if E_pad != E:
        idx = jnp.pad(idx, ((0, 0), (0, E_pad - E)))          # padded edges -> node 0
    x_edge = z.astype(jnp.bfloat16)[idx.T].reshape(E_pad, D2)  # (E_pad, 2D) bf16

    # Transposed (out, in) weights for feature-major matmuls; bf16 streams.
    w1t = params["w1"].T.astype(jnp.bfloat16)    # (2D, 2D) - fc1 fused (unsplit)
    w2t = params["w2"].T.astype(jnp.bfloat16)    # (D, 2D)
    w3t = params["w3"].T.astype(jnp.bfloat16)    # (D, D)
    w4t = params["w4"].T.astype(jnp.bfloat16)    # (D, D)
    w5 = params["w5"].astype(jnp.float32)        # (D, 1) - VPU path stays f32
    bias = jnp.concatenate(
        [params["b1"].T, params["b2"].T, params["b3"].T,
         params["b4"].T, params["b5"].T], axis=0).astype(jnp.float32)  # (5D+1, 1)

    grid = (E_pad // tile,)

    # Advisory cost estimate for XLA's scheduler around the custom call.
    flops = E_pad * (2 * D2 * D2 + 2 * D2 * D + 2 * D * D + 2 * D * D + 2 * D)
    weight_bytes = 2 * (D2 * D2 + D * D2 + 2 * D * D) + 4 * (D + 5 * D + 1)
    bytes_accessed = 2 * E_pad * D2 + 4 * E_pad + weight_bytes

    out = pl.pallas_call(
        _link_mlp_kernel,
        out_shape=jax.ShapeDtypeStruct((1, E_pad), jnp.float32),
        grid_spec=pltpu.PrefetchScalarGridSpec(
            num_scalar_prefetch=0,
            grid=grid,
            in_specs=[
                pl.BlockSpec((tile, D2), lambda i: (i, 0)),   # edge-feature tile
                _const_spec((D2, D2)),                        # fc1
                _const_spec((D, D2)),                         # fc2
                _const_spec((D, D)),                          # fc3
                _const_spec((D, D)),                          # fc4
                _const_spec((D, 1)),                          # fc5
                _const_spec((5 * D + 1, 1)),                  # packed biases
            ],
            out_specs=pl.BlockSpec((1, tile), lambda i: (0, i)),  # lane-dense
        ),
        compiler_params=pltpu.CompilerParams(
            dimension_semantics=("parallel",)),
        cost_estimate=pl.CostEstimate(
            flops=int(flops),
            transcendentals=int(E_pad),
            bytes_accessed=int(bytes_accessed)),
    )(x_edge, w1t, w2t, w3t, w4t, w5, bias)

    # Back to the PyTorch (E, 1) output shape, dropping padded edges.
    return out[0, :E].reshape(E, 1)


def init_link_predictor_params(key, input_dim):
    """Deterministic init mimicking nn.Linear default (uniform +-1/sqrt(fan_in)).

    Weights stored (in_features, out_features); biases (1, out_features); f32.
    """
    dims = [
        (2 * input_dim, 2 * input_dim),  # fc1
        (2 * input_dim, input_dim),      # fc2
        (input_dim, input_dim),          # fc3
        (input_dim, input_dim),          # fc4
        (input_dim, 1),                  # fc5
    ]
    params = {}
    for idx, (fan_in, fan_out) in enumerate(dims, start=1):
        key, kw, kb = jax.random.split(key, 3)
        bound = 1.0 / jnp.sqrt(fan_in)
        params[f"w{idx}"] = jax.random.uniform(
            kw, (fan_in, fan_out), jnp.float32, minval=-bound, maxval=bound)
        params[f"b{idx}"] = jax.random.uniform(
            kb, (1, fan_out), jnp.float32, minval=-bound, maxval=bound)
    return params


def _reference_forward(z, edge_index, params):
    """Pure-JAX f32 reference of the PyTorch forward (eval mode)."""
    row, col = edge_index[0], edge_index[1]
    x = jnp.concatenate([z[row], z[col]], axis=1)
    x = jax.nn.relu(x @ params["w1"] + params["b1"])
    x = jax.nn.relu(x @ params["w2"] + params["b2"])
    x = jax.nn.relu(x @ params["w3"] + params["b3"])
    x = jax.nn.relu(x @ params["w4"] + params["b4"])
    return jax.nn.sigmoid(x @ params["w5"] + params["b5"])


if __name__ == "__main__":
    input_dim = 32     # D
    num_nodes = 64     # N
    num_edges = 300    # E -> tile shrinks to 256, E_pad = 512, 2 parallel grid steps

    key = jax.random.PRNGKey(0)
    key, kz, ke = jax.random.split(key, 3)

    z = jax.random.normal(kz, (num_nodes, input_dim), jnp.float32)
    edge_index = jax.random.randint(ke, (2, num_edges), 0, num_nodes, jnp.int32)

    params = init_link_predictor_params(jax.random.PRNGKey(0), input_dim)

    out = link_predictor_forward(z, edge_index, params)
    out = jax.block_until_ready(out)

    ref = _reference_forward(z, edge_index, params)
    assert out.shape == (num_edges, 1), out.shape
    # bf16 activation/weight streams (f32 accumulation) vs the pure-f32
    # reference: tolerance relaxed accordingly (sigmoid outputs in [0, 1]).
    max_err = float(jnp.max(jnp.abs(out - ref)))
    assert max_err < 2e-2, max_err

    print("KERNEL_OK")
</pallas_src>

<mosaic_0001>
module attributes {stable_mosaic.version = 11 : i64} {
  func.func @_link_mlp_kernel(%arg0: i32, %arg1: memref<256x64xbf16, #tpu.memory_space<vmem>>, %arg2: memref<64x64xbf16, #tpu.memory_space<vmem>>, %arg3: memref<32x64xbf16, #tpu.memory_space<vmem>>, %arg4: memref<32x32xbf16, #tpu.memory_space<vmem>>, %arg5: memref<32x32xbf16, #tpu.memory_space<vmem>>, %arg6: memref<32x1xf32, #tpu.memory_space<vmem>>, %arg7: memref<161x1xf32, #tpu.memory_space<vmem>>, %arg8: memref<1x256xf32, #tpu.memory_space<vmem>>) attributes {dimension_semantics = [#tpu.dimension_semantics<parallel>], iteration_bounds = array<i64: 2>, scalar_prefetch = 0 : i64, scratch_operands = 0 : i64, tpu.core_type = #tpu.core_type<tc>, window_params = [{transform_indices = @transform_0, window_bounds = array<i64: 256, 64>}, {pipeline_mode = #tpu.pipeline_mode<synchronous>, transform_indices = @transform_1, window_bounds = array<i64: 64, 64>}, {pipeline_mode = #tpu.pipeline_mode<synchronous>, transform_indices = @transform_2, window_bounds = array<i64: 32, 64>}, {pipeline_mode = #tpu.pipeline_mode<synchronous>, transform_indices = @transform_3, window_bounds = array<i64: 32, 32>}, {pipeline_mode = #tpu.pipeline_mode<synchronous>, transform_indices = @transform_4, window_bounds = array<i64: 32, 32>}, {pipeline_mode = #tpu.pipeline_mode<synchronous>, transform_indices = @transform_5, window_bounds = array<i64: 32, 1>}, {pipeline_mode = #tpu.pipeline_mode<synchronous>, transform_indices = @transform_6, window_bounds = array<i64: 161, 1>}, {transform_indices = @transform_7, window_bounds = array<i64: 1, 256>}]} {
    %c0 = arith.constant 0 : index
    %c0_0 = arith.constant 0 : index
    %0 = vector.load %arg7[%c0, %c0_0] : memref<161x1xf32, #tpu.memory_space<vmem>>, vector<64x1xf32>
    %c64 = arith.constant 64 : index
    %c0_1 = arith.constant 0 : index
    %1 = vector.load %arg7[%c64, %c0_1] : memref<161x1xf32, #tpu.memory_space<vmem>>, vector<32x1xf32>
    %c96 = arith.constant 96 : index
    %c0_2 = arith.constant 0 : index
    %2 = vector.load %arg7[%c96, %c0_2] : memref<161x1xf32, #tpu.memory_space<vmem>>, vector<32x1xf32>
    %c128 = arith.constant 128 : index
    %c0_3 = arith.constant 0 : index
    %3 = vector.load %arg7[%c128, %c0_3] : memref<161x1xf32, #tpu.memory_space<vmem>>, vector<32x1xf32>
    %c160 = arith.constant 160 : index
    %c0_4 = arith.constant 0 : index
    %4 = vector.load %arg7[%c160, %c0_4] : memref<161x1xf32, #tpu.memory_space<vmem>>, vector<1x1xf32>
    %c0_5 = arith.constant 0 : index
    %c0_6 = arith.constant 0 : index
    %5 = vector.load %arg1[%c0_5, %c0_6] : memref<256x64xbf16, #tpu.memory_space<vmem>>, vector<256x64xbf16>
    %6 = tpu.transpose %5, [1, 0] : vector<256x64xbf16> -> vector<64x256xbf16>
    %c0_7 = arith.constant 0 : index
    %c0_8 = arith.constant 0 : index
    %7 = vector.load %arg2[%c0_7, %c0_8] : memref<64x64xbf16, #tpu.memory_space<vmem>>, vector<64x64xbf16>
    %cst = arith.constant dense<0.000000e+00> : vector<64x256xf32>
    %8 = tpu.matmul %7, %6, %cst {dimension_numbers = #tpu.dot_dimension_numbers<[1], [0], [0], [1], [0, 0, 1, 1], [], []>} : vector<64x64xbf16>, vector<64x256xbf16>, vector<64x256xf32> -> vector<64x256xf32>
    %9 = vector.broadcast %0 : vector<64x1xf32> to vector<64x256xf32>
    %10 = arith.addf %8, %9 : vector<64x256xf32>
    %cst_9 = arith.constant 0.000000e+00 : f32
    %11 = vector.broadcast %cst_9 : f32 to vector<64x256xf32>
    %12 = arith.maximumf %10, %11 : vector<64x256xf32>
    %c0_10 = arith.constant 0 : index
    %c0_11 = arith.constant 0 : index
    %13 = vector.load %arg3[%c0_10, %c0_11] : memref<32x64xbf16, #tpu.memory_space<vmem>>, vector<32x64xbf16>
    %14 = arith.truncf %12 : vector<64x256xf32> to vector<64x256xbf16>
    %cst_12 = arith.constant dense<0.000000e+00> : vector<32x256xf32>
    %15 = tpu.matmul %13, %14, %cst_12 {dimension_numbers = #tpu.dot_dimension_numbers<[1], [0], [0], [1], [0, 0, 1, 1], [], []>} : vector<32x64xbf16>, vector<64x256xbf16>, vector<32x256xf32> -> vector<32x256xf32>
    %16 = vector.broadcast %1 : vector<32x1xf32> to vector<32x256xf32>
    %17 = arith.addf %15, %16 : vector<32x256xf32>
    %cst_13 = arith.constant 0.000000e+00 : f32
    %18 = vector.broadcast %cst_13 : f32 to vector<32x256xf32>
    %19 = arith.maximumf %17, %18 : vector<32x256xf32>
    %c0_14 = arith.constant 0 : index
    %c0_15 = arith.constant 0 : index
    %20 = vector.load %arg4[%c0_14, %c0_15] : memref<32x32xbf16, #tpu.memory_space<vmem>>, vector<32x32xbf16>
    %21 = arith.truncf %19 : vector<32x256xf32> to vector<32x256xbf16>
    %cst_16 = arith.constant dense<0.000000e+00> : vector<32x256xf32>
    %22 = tpu.matmul %20, %21, %cst_16 {dimension_numbers = #tpu.dot_dimension_numbers<[1], [0], [0], [1], [0, 0, 1, 1], [], []>} : vector<32x32xbf16>, vector<32x256xbf16>, vector<32x256xf32> -> vector<32x256xf32>
    %23 = vector.broadcast %2 : vector<32x1xf32> to vector<32x256xf32>
    %24 = arith.addf %22, %23 : vector<32x256xf32>
    %cst_17 = arith.constant 0.000000e+00 : f32
    %25 = vector.broadcast %cst_17 : f32 to vector<32x256xf32>
    %26 = arith.maximumf %24, %25 : vector<32x256xf32>
    %c0_18 = arith.constant 0 : index
    %c0_19 = arith.constant 0 : index
    %27 = vector.load %arg5[%c0_18, %c0_19] : memref<32x32xbf16, #tpu.memory_space<vmem>>, vector<32x32xbf16>
    %28 = arith.truncf %26 : vector<32x256xf32> to vector<32x256xbf16>
    %cst_20 = arith.constant dense<0.000000e+00> : vector<32x256xf32>
    %29 = tpu.matmul %27, %28, %cst_20 {dimension_numbers = #tpu.dot_dimension_numbers<[1], [0], [0], [1], [0, 0, 1, 1], [], []>} : vector<32x32xbf16>, vector<32x256xbf16>, vector<32x256xf32> -> vector<32x256xf32>
    %30 = vector.broadcast %3 : vector<32x1xf32> to vector<32x256xf32>
    %31 = arith.addf %29, %30 : vector<32x256xf32>
    %cst_21 = arith.constant 0.000000e+00 : f32
    %32 = vector.broadcast %cst_21 : f32 to vector<32x256xf32>
    %33 = arith.maximumf %31, %32 : vector<32x256xf32>
    %c0_22 = arith.constant 0 : index
    %c0_23 = arith.constant 0 : index
    %34 = vector.load %arg6[%c0_22, %c0_23] : memref<32x1xf32, #tpu.memory_space<vmem>>, vector<32x1xf32>
    %35 = vector.broadcast %34 : vector<32x1xf32> to vector<32x256xf32>
    %36 = arith.mulf %33, %35 : vector<32x256xf32>
    %cst_24 = arith.constant dense<0.000000e+00> : vector<256xf32>
    %37 = vector.multi_reduction <add>, %36, %cst_24 [0] : vector<32x256xf32> to vector<256xf32>
    %38 = vector.shape_cast %37 : vector<256xf32> to vector<1x256xf32>
    %39 = vector.broadcast %4 : vector<1x1xf32> to vector<1x256xf32>
    %40 = arith.addf %38, %39 : vector<1x256xf32>
    %41 = arith.negf %40 : vector<1x256xf32>
    %42 = math.exp %41 : vector<1x256xf32>
    %cst_25 = arith.constant 1.000000e+00 : f32
    %43 = vector.broadcast %cst_25 : f32 to vector<1x256xf32>
    %44 = arith.addf %43, %42 : vector<1x256xf32>
    %45 = arith.divf %43, %44 : vector<1x256xf32>
    %c0_26 = arith.constant 0 : index
    %c0_27 = arith.constant 0 : index
    %46 = vector.load %arg8[%c0_26, %c0_27] : memref<1x256xf32, #tpu.memory_space<vmem>>, vector<1x256xf32>
    tpu.vector_store %arg8[%c0_26, %c0_27], %45 {strides = array<i32>} : memref<1x256xf32, #tpu.memory_space<vmem>>, vector<1x256xf32>,
    return
  }
  func.func @transform_0(%arg0: i32) -> (i32, i32) {
    %c0_i32 = arith.constant 0 : i32
    %c0_i32_0 = arith.constant 0 : i32
    return %arg0, %c0_i32 : i32, i32
  }
  func.func @transform_1(%arg0: i32) -> (i32, i32) {
    %c0_i32 = arith.constant 0 : i32
    %c0_i32_0 = arith.constant 0 : i32
    %c0_i32_1 = arith.constant 0 : i32
    return %c0_i32, %c0_i32_0 : i32, i32
  }
  func.func @transform_2(%arg0: i32) -> (i32, i32) {
    %c0_i32 = arith.constant 0 : i32
    %c0_i32_0 = arith.constant 0 : i32
    %c0_i32_1 = arith.constant 0 : i32
    return %c0_i32, %c0_i32_0 : i32, i32
  }
  func.func @transform_3(%arg0: i32) -> (i32, i32) {
    %c0_i32 = arith.constant 0 : i32
    %c0_i32_0 = arith.constant 0 : i32
    %c0_i32_1 = arith.constant 0 : i32
    return %c0_i32, %c0_i32_0 : i32, i32
  }
  func.func @transform_4(%arg0: i32) -> (i32, i32) {
    %c0_i32 = arith.constant 0 : i32
    %c0_i32_0 = arith.constant 0 : i32
    %c0_i32_1 = arith.constant 0 : i32
    return %c0_i32, %c0_i32_0 : i32, i32
  }
  func.func @transform_5(%arg0: i32) -> (i32, i32) {
    %c0_i32 = arith.constant 0 : i32
    %c0_i32_0 = arith.constant 0 : i32
    %c0_i32_1 = arith.constant 0 : i32
    return %c0_i32, %c0_i32_0 : i32, i32
  }
  func.func @transform_6(%arg0: i32) -> (i32, i32) {
    %c0_i32 = arith.constant 0 : i32
    %c0_i32_0 = arith.constant 0 : i32
    %c0_i32_1 = arith.constant 0 : i32
    return %c0_i32, %c0_i32_0 : i32, i32
  }
  func.func @transform_7(%arg0: i32) -> (i32, i32) {
    %c0_i32 = arith.constant 0 : i32
    %c0_i32_0 = arith.constant 0 : i32
    return %c0_i32, %arg0 : i32, i32
  }
}

</mosaic_0001>

<llo_original>
// kernel: link_predictor_forward.1
$region0: #{link_predictor_forward.1}
  #allocation0 [shape = 'u32[]', space=smem, size = 0x4, offset = 0x4, fixed_abs, tag = 'smem constant byte address 0x4 - core index']
  #allocation1 [shape = 'u32[144,128]{1,0:T(1,128)}', space=vmem, size = 0x12000, scoped, tag = 'internal scratch']
  %s0 = inlined_call_operand.vmem [shape: bf16[512,64], index: 0, kind: input, shape index: {}]
  %s1 = inlined_call_operand.vmem [shape: bf16[64,64], index: 1, kind: input, shape index: {}]
  %s2 = inlined_call_operand.vmem [shape: bf16[32,64], index: 2, kind: input, shape index: {}]
  %s3 = inlined_call_operand.vmem [shape: bf16[32,32], index: 3, kind: input, shape index: {}]
  %s4 = inlined_call_operand.vmem [shape: bf16[32,32], index: 4, kind: input, shape index: {}]
  %s5 = inlined_call_operand.vmem [shape: f32[32,1], index: 5, kind: input, shape index: {}]
  %s6 = inlined_call_operand.vmem [shape: f32[161,1], index: 6, kind: input, shape index: {}]
  %s7 = inlined_call_operand.vmem [shape: f32[1,512], index: 7, kind: output, shape index: {}]
  %s8 = sld [smem:[#allocation0]]
  $region61: #{link_predictor_forward.1} parent=0
    _
  %s10 = ssub.s32 1, %s8
  %s11 = scalar_select 0, %s10, %s8
  loop: start=0, step=1, limit=4
  $region2: #{link_predictor_forward.1} parent=0 // loop_pre_header
    _
  $region3: #{link_predictor_forward.1} parent=0 // loop_header
    %s13 = sphi 0, %s17
    %p14 = scmp.ge.s32.totalorder %s13, 4
    %s23 = sphi 0, %s25
    %s26 = sphi 0, %s23
    %s27 = sphi 0, %s26
    %s43 = sphi 0, %s27
    %s47 = sphi 0, %s47
    %s49 = sphi 0, %s47
    %s50 = sphi 0, %s49
    %s64 = sphi 0, %s50
    %s68 = sphi 0, %s68
    %s70 = sphi 0, %s68
    %s71 = sphi 0, %s70
    %s85 = sphi 0, %s71
    %s89 = sphi 0, %s89
    %s91 = sphi 0, %s89
    %s92 = sphi 0, %s91
    %s106 = sphi 0, %s92
    %s110 = sphi 0, %s110
    %s112 = sphi 0, %s110
    %s113 = sphi 0, %s112
    %s127 = sphi 0, %s113
    %s131 = sphi 0, %s131
    %s133 = sphi 0, %s131
    %s134 = sphi 0, %s133
    %s148 = sphi 0, %s134
    %s152 = sphi 0, %s152
    %s154 = sphi 0, %s152
    %s155 = sphi 0, %s154
    %s169 = sphi 0, %s155
    %s175 = sphi 0, %s177
    %s178 = sphi 0, %s175
    %s179 = sphi 0, %s178
    %s195 = sphi 0, %s179
  $region4: #{link_predictor_forward.1} parent=0 // loop_header_branch
    %16 = sbr.rel (%p14) target = $region8
  $region5: #{link_predictor_forward.1} parent=0 // loop_body
    %s18 = ssub.s32 %s13, 1
    %s19 = ssub.s32 %s13, 2
    %s20 = sadd.s32 %s13, 1
    %s21 = ssub.s32 %s13, %s20
    %p22 = scmp.eq.s32.totalorder %s21, 0
    %s24 = sadd.s32 %s23, 1
    %s25 = scalar_select %p22, %s23, %s24
    %p28 = pneg %p22
    %p29 = scmp.eq.s32.totalorder %s13, 1
    %p30 = por %p28, %p29
    %p31 = scmp.ne.s32.totalorder %s23, %s26
    %p32 = scmp.eq.s32.totalorder %s13, 0
    %p33 = por %p31, %p32
    %p34 = scmp.ne.s32.totalorder %s23, %s26
    %p35 = scmp.eq.s32.totalorder %s18, 1
    %p36 = por %p34, %p35
    %p37 = scmp.ne.s32.totalorder %s26, %s27
    %p38 = scmp.eq.s32.totalorder %s18, 0
    %p39 = por %p37, %p38
    %p40 = scmp.ne.s32.totalorder %s26, %s27
    %p41 = scmp.eq.s32.totalorder %s19, 1
    %p42 = por %p40, %p41
    %p44 = scmp.ne.s32.totalorder %s27, %s43
    %p45 = scmp.eq.s32.totalorder %s19, 0
    %p46 = por %p44, %p45
    %s48 = sadd.s32 %s47, 1
    %p51 = scmp.eq.s32.totalorder %s13, 1
    %p52 = scmp.ne.s32.totalorder %s47, %s49
    %p53 = scmp.eq.s32.totalorder %s13, 0
    %p54 = por %p52, %p53
    %p55 = scmp.ne.s32.totalorder %s47, %s49
    %p56 = scmp.eq.s32.totalorder %s18, 1
    %p57 = por %p55, %p56
    %p58 = scmp.ne.s32.totalorder %s49, %s50
    %p59 = scmp.eq.s32.totalorder %s18, 0
    %p60 = por %p58, %p59
    %p61 = scmp.ne.s32.totalorder %s49, %s50
    %p62 = scmp.eq.s32.totalorder %s19, 1
    %p63 = por %p61, %p62
    %p65 = scmp.ne.s32.totalorder %s50, %s64
    %p66 = scmp.eq.s32.totalorder %s19, 0
    %p67 = por %p65, %p66
    %s69 = sadd.s32 %s68, 1
    %p72 = scmp.eq.s32.totalorder %s13, 1
    %p73 = scmp.ne.s32.totalorder %s68, %s70
    %p74 = scmp.eq.s32.totalorder %s13, 0
    %p75 = por %p73, %p74
    %p76 = scmp.ne.s32.totalorder %s68, %s70
    %p77 = scmp.eq.s32.totalorder %s18, 1
    %p78 = por %p76, %p77
    %p79 = scmp.ne.s32.totalorder %s70, %s71
    %p80 = scmp.eq.s32.totalorder %s18, 0
    %p81 = por %p79, %p80
    %p82 = scmp.ne.s32.totalorder %s70, %s71
    %p83 = scmp.eq.s32.totalorder %s19, 1
    %p84 = por %p82, %p83
    %p86 = scmp.ne.s32.totalorder %s71, %s85
    %p87 = scmp.eq.s32.totalorder %s19, 0
    %p88 = por %p86, %p87
    %s90 = sadd.s32 %s89, 1
    %p93 = scmp.eq.s32.totalorder %s13, 1
    %p94 = scmp.ne.s32.totalorder %s89, %s91
    %p95 = scmp.eq.s32.totalorder %s13, 0
    %p96 = por %p94, %p95
    %p97 = scmp.ne.s32.totalorder %s89, %s91
    %p98 = scmp.eq.s32.totalorder %s18, 1
    %p99 = por %p97, %p98
    %p100 = scmp.ne.s32.totalorder %s91, %s92
    %p101 = scmp.eq.s32.totalorder %s18, 0
    %p102 = por %p100, %p101
    %p103 = scmp.ne.s32.totalorder %s91, %s92
    %p104 = scmp.eq.s32.totalorder %s19, 1
    %p105 = por %p103, %p104
    %p107 = scmp.ne.s32.totalorder %s92, %s106
    %p108 = scmp.eq.s32.totalorder %s19, 0
    %p109 = por %p107, %p108
    %s111 = sadd.s32 %s110, 1
    %p114 = scmp.eq.s32.totalorder %s13, 1
    %p115 = scmp.ne.s32.totalorder %s110, %s112
    %p116 = scmp.eq.s32.totalorder %s13, 0
    %p117 = por %p115, %p116
    %p118 = scmp.ne.s32.totalorder %s110, %s112
    %p119 = scmp.eq.s32.totalorder %s18, 1
    %p120 = por %p118, %p119
    %p121 = scmp.ne.s32.totalorder %s112, %s113
    %p122 = scmp.eq.s32.totalorder %s18, 0
    %p123 = por %p121, %p122
    %p124 = scmp.ne.s32.totalorder %s112, %s113
    %p125 = scmp.eq.s32.totalorder %s19, 1
    %p126 = por %p124, %p125
    %p128 = scmp.ne.s32.totalorder %s113, %s127
    %p129 = scmp.eq.s32.totalorder %s19, 0
    %p130 = por %p128, %p129
    %s132 = sadd.s32 %s131, 1
    %p135 = scmp.eq.s32.totalorder %s13, 1
    %p136 = scmp.ne.s32.totalorder %s131, %s133
    %p137 = scmp.eq.s32.totalorder %s13, 0
    %p138 = por %p136, %p137
    %p139 = scmp.ne.s32.totalorder %s131, %s133
    %p140 = scmp.eq.s32.totalorder %s18, 1
    %p141 = por %p139, %p140
    %p142 = scmp.ne.s32.totalorder %s133, %s134
    %p143 = scmp.eq.s32.totalorder %s18, 0
    %p144 = por %p142, %p143
    %p145 = scmp.ne.s32.totalorder %s133, %s134
    %p146 = scmp.eq.s32.totalorder %s19, 1
    %p147 = por %p145, %p146
    %p149 = scmp.ne.s32.totalorder %s134, %s148
    %p150 = scmp.eq.s32.totalorder %s19, 0
    %p151 = por %p149, %p150
    %s153 = sadd.s32 %s152, 1
    %p156 = scmp.eq.s32.totalorder %s13, 1
    %p157 = scmp.ne.s32.totalorder %s152, %s154
    %p158 = scmp.eq.s32.totalorder %s13, 0
    %p159 = por %p157, %p158
    %p160 = scmp.ne.s32.totalorder %s152, %s154
    %p161 = scmp.eq.s32.totalorder %s18, 1
    %p162 = por %p160, %p161
    %p163 = scmp.ne.s32.totalorder %s154, %s155
    %p164 = scmp.eq.s32.totalorder %s18, 0
    %p165 = por %p163, %p164
    %p166 = scmp.ne.s32.totalorder %s154, %s155
    %p167 = scmp.eq.s32.totalorder %s19, 1
    %p168 = por %p166, %p167
    %p170 = scmp.ne.s32.totalorder %s155, %s169
    %p171 = scmp.eq.s32.totalorder %s19, 0
    %p172 = por %p170, %p171
    %s173 = ssub.s32 %s13, %s20
    %p174 = scmp.eq.s32.totalorder %s173, 0
    %s176 = sadd.s32 %s175, 1
    %s177 = scalar_select %p174, %s175, %s176
    %p180 = pneg %p174
    %p181 = scmp.eq.s32.totalorder %s13, 1
    %p182 = por %p180, %p181
    %p183 = scmp.ne.s32.totalorder %s175, %s178
    %p184 = scmp.eq.s32.totalorder %s13, 0
    %p185 = por %p183, %p184
    %p186 = scmp.ne.s32.totalorder %s175, %s178
    %p187 = scmp.eq.s32.totalorder %s18, 1
    %p188 = por %p186, %p187
    %p189 = scmp.ne.s32.totalorder %s178, %s179
    %p190 = scmp.eq.s32.totalorder %s18, 0
    %p191 = por %p189, %p190
    %p192 = scmp.ne.s32.totalorder %s178, %s179
    %p193 = scmp.eq.s32.totalorder %s19, 1
    %p194 = por %p192, %p193
    %p196 = scmp.ne.s32.totalorder %s179, %s195
    %p197 = scmp.eq.s32.totalorder %s19, 0
    %p198 = por %p196, %p197
    %p199 = scmp.le.s32.totalorder 1, %s13
    %p200 = scmp.lt.s32.totalorder %s13, 3
    %p201 = pnand %p199, %p200
    %p202 = pneg %p201
    // Predicated region
    $region9: #{link_predictor_forward.1} parent=5 // pred_check
      _
    $region10: #{link_predictor_forward.1} parent=5 // pred_check_branch
      %204 = sbr.rel (%p201) target = $region12
    $region11: #{link_predictor_forward.1} parent=5 // pred_region
      %s205 = ssub.s32 %s13, 1
      // Predicated region
      $region13: #{link_predictor_forward.1} parent=11 // pred_check
        %p206 = pneg %p60
      $region14: #{link_predictor_forward.1} parent=11 // pred_check_branch
        %208 = sbr.rel (%p206) target = $region16
      $region15: #{link_predictor_forward.1} parent=11 // pred_region
        _
      $region16: #{link_predictor_forward.1} parent=11 // pred_fallthru
        _
      // Predicated region
      $region17: #{link_predictor_forward.1} parent=11 // pred_check
        %p209 = pneg %p81
      $region18: #{link_predictor_forward.1} parent=11 // pred_check_branch
        %211 = sbr.rel (%p209) target = $region20
      $region19: #{link_predictor_forward.1} parent=11 // pred_region
        _
      $region20: #{link_predictor_forward.1} parent=11 // pred_fallthru
        _
      // Predicated region
      $region21: #{link_predictor_forward.1} parent=11 // pred_check
        %p212 = pneg %p102
      $region22: #{link_predictor_forward.1} parent=11 // pred_check_branch
        %214 = sbr.rel (%p212) target = $region24
      $region23: #{link_predictor_forward.1} parent=11 // pred_region
        _
      $region24: #{link_predictor_forward.1} parent=11 // pred_fallthru
        _
      // Predicated region
      $region25: #{link_predictor_forward.1} parent=11 // pred_check
        %p215 = pneg %p123
      $region26: #{link_predictor_forward.1} parent=11 // pred_check_branch
        %217 = sbr.rel (%p215) target = $region28
      $region27: #{link_predictor_forward.1} parent=11 // pred_region
        _
      $region28: #{link_predictor_forward.1} parent=11 // pred_fallthru
        _
      // Predicated region
      $region29: #{link_predictor_forward.1} parent=11 // pred_check
        %p218 = pneg %p144
      $region30: #{link_predictor_forward.1} parent=11 // pred_check_branch
        %220 = sbr.rel (%p218) target = $region32
      $region31: #{link_predictor_forward.1} parent=11 // pred_region
        _
      $region32: #{link_predictor_forward.1} parent=11 // pred_fallthru
        _
      // Predicated region
      $region33: #{link_predictor_forward.1} parent=11 // pred_check
        %p221 = pneg %p165
      $region34: #{link_predictor_forward.1} parent=11 // pred_check_branch
        %223 = sbr.rel (%p221) target = $region36
      $region35: #{link_predictor_forward.1} parent=11 // pred_region
        _
      $region36: #{link_predictor_forward.1} parent=11 // pred_fallthru
        _
    $region12: #{link_predictor_forward.1} parent=5 // pred_fallthru
      _
    %p224 = scmp.lt.s32.totalorder %s13, 2
    // Predicated region
    $region37: #{link_predictor_forward.1} parent=5 // pred_check
      %p225 = pneg %p224
    $region38: #{link_predictor_forward.1} parent=5 // pred_check_branch
      %227 = sbr.rel (%p225) target = $region40
    $region39: #{link_predictor_forward.1} parent=5 // pred_region
      // Predicated region
      $region41: #{link_predictor_forward.1} parent=39 // pred_check
        %p228 = pneg %p33
      $region42: #{link_predictor_forward.1} parent=39 // pred_check_branch
        %230 = sbr.rel (%p228) target = $region44
      $region43: #{link_predictor_forward.1} parent=39 // pred_region
        %s231 = smul.u32 32, %s13
        %p232 = scmp.lt.s32.totalorder %s231, 63
        %s233 = scalar_select %p232, %s231, 63
        %s234 = smul.addr %s233, 4
        %s235 = scalar_lea.vmem %s0, %s234
        %s236 = smul.u32 32, %s13
      $region44: #{link_predictor_forward.1} parent=39 // pred_fallthru
        _
    $region40: #{link_predictor_forward.1} parent=5 // pred_fallthru
      _
    %p237 = scmp.le.s32.totalorder 1, %s13
    %p238 = scmp.lt.s32.totalorder %s13, 3
    %p239 = pnand %p237, %p238
    %p240 = pneg %p239
    // Predicated region
    $region45: #{link_predictor_forward.1} parent=5 // pred_check
      _
    $region46: #{link_predictor_forward.1} parent=5 // pred_check_branch
      %242 = sbr.rel (%p239) target = $region48
    $region47: #{link_predictor_forward.1} parent=5 // pred_region
      %s243 = ssub.s32 %s13, 1
      %s244 = smul.u32 32, %s18
      %p245 = scmp.lt.s32.totalorder %s244, 63
      %s246 = scalar_select %p245, %s244, 63
      %s247 = smul.addr %s246, 4
      %s248 = scalar_lea.vmem %s0, %s247
      %p249 = pneg %p39
      %p250 = pneg %p36
      %p251 = pneg %p60
      %p252 = pneg %p57
      %p253 = pneg %p81
      %p254 = pneg %p78
      %p255 = pneg %p102
      %p256 = pneg %p99
      %p257 = pneg %p123
      %p258 = pneg %p120
      %p259 = pneg %p144
      %p260 = pneg %p141
      %p261 = pneg %p165
      %p262 = pneg %p162
      %p263 = pneg %p191
      %p264 = pneg %p188
      %s265 = smul.u32 2, %s18
      %p266 = scmp.lt.s32.totalorder %s265, 3
      %s267 = scalar_select %p266, %s265, 3
      %s268 = scalar_lea.vmem %s7, %s267
      %s269 = smul.u32 32, %s18
      %p270 = scmp.lt.s32.totalorder %s269, 63
      %s271 = scalar_select %p270, %s269, 63
      %s272 = smul.addr %s271, 4
      %s273 = scalar_lea.vmem %s0, %s272
      %s274 = smul.u32 32, %s18
      %s275 = smul.u32 2, %s18
      %p276 = scmp.lt.s32.totalorder %s275, 3
      %s277 = scalar_select %p276, %s275, 3
      %s278 = scalar_lea.vmem %s7, %s277
      %s279 = smul.u32 2, %s18
      %v281 = vld [vmem:[%s6] sm:$0xff]
      %v282 = vld [vmem:[%s6 + $0x8] sm:$0xff]
      %v283 = vld [vmem:[%s6 + $0x10] sm:$0xff]
      %v284 = vld [vmem:[%s6 + $0x18] sm:$0xff]
      %v285 = vld [vmem:[%s6 + $0x20] sm:$0xff]
      %v286 = vld [vmem:[%s6 + $0x28] sm:$0xff]
      %v287 = vld [vmem:[%s6 + $0x30] sm:$0xff]
      %v288 = vld [vmem:[%s6 + $0x38] sm:$0xff]
      %v289 = vld [vmem:[%s6 + $0x40] sm:$0xff]
      %v290 = vld [vmem:[%s6 + $0x48] sm:$0xff]
      %v291 = vld [vmem:[%s6 + $0x50] sm:$0xff]
      %v292 = vld [vmem:[%s6 + $0x58] sm:$0xff]
      %v293 = vld [vmem:[%s6 + $0x60] sm:$0xff]
      %v294 = vld [vmem:[%s6 + $0x68] sm:$0xff]
      %v295 = vld [vmem:[%s6 + $0x70] sm:$0xff]
      %v296 = vld [vmem:[%s6 + $0x78] sm:$0xff]
      %v297 = vld [vmem:[%s6 + $0x80] sm:$0xff]
      %v298 = vld [vmem:[%s6 + $0x88] sm:$0xff]
      %v299 = vld [vmem:[%s6 + $0x90] sm:$0xff]
      %v300 = vld [vmem:[%s6 + $0x98] sm:$0xff]
      %v301 = vld [vmem:[%s6 + $0xa0] sm:$0x1]
      %v302 = vld [vmem:[%s273] sm:$0xf]
      %v303 = vld [vmem:[%s273 + $0x4] sm:$0xf]
      %v304 = vld [vmem:[%s273 + $0x8] sm:$0xf]
      %v305 = vld [vmem:[%s273 + $0xc] sm:$0xf]
      %v306 = vld [vmem:[%s273 + $0x10] sm:$0xf]
      %v307 = vld [vmem:[%s273 + $0x14] sm:$0xf]
      %v308 = vld [vmem:[%s273 + $0x18] sm:$0xf]
      %v309 = vld [vmem:[%s273 + $0x1c] sm:$0xf]
      %v310 = vld [vmem:[%s273 + $0x20] sm:$0xf]
      %v311 = vld [vmem:[%s273 + $0x24] sm:$0xf]
      %v312 = vld [vmem:[%s273 + $0x28] sm:$0xf]
      %v313 = vld [vmem:[%s273 + $0x2c] sm:$0xf]
      %v314 = vld [vmem:[%s273 + $0x30] sm:$0xf]
      %v315 = vld [vmem:[%s273 + $0x34] sm:$0xf]
      %v316 = vld [vmem:[%s273 + $0x38] sm:$0xf]
      %v317 = vld [vmem:[%s273 + $0x3c] sm:$0xf]
      %v318 = vld [vmem:[%s273 + $0x40] sm:$0xf]
      %v319 = vld [vmem:[%s273 + $0x44] sm:$0xf]
      %v320 = vld [vmem:[%s273 + $0x48] sm:$0xf]
      %v321 = vld [vmem:[%s273 + $0x4c] sm:$0xf]
      %v322 = vld [vmem:[%s273 + $0x50] sm:$0xf]
      %v323 = vld [vmem:[%s273 + $0x54] sm:$0xf]
      %v324 = vld [vmem:[%s273 + $0x58] sm:$0xf]
      %v325 = vld [vmem:[%s273 + $0x5c] sm:$0xf]
      %v326 = vld [vmem:[%s273 + $0x60] sm:$0xf]
      %v327 = vld [vmem:[%s273 + $0x64] sm:$0xf]
      %v328 = vld [vmem:[%s273 + $0x68] sm:$0xf]
      %v329 = vld [vmem:[%s273 + $0x6c] sm:$0xf]
      %v330 = vld [vmem:[%s273 + $0x70] sm:$0xf]
      %v331 = vld [vmem:[%s273 + $0x74] sm:$0xf]
      %v332 = vld [vmem:[%s273 + $0x78] sm:$0xf]
      %v333 = vld [vmem:[%s273 + $0x7c] sm:$0xf]
      %v334 = vld [vmem:[%s1] sm:$0xf]
      %v335 = vld [vmem:[%s1 + $0x4] sm:$0xf]
      %v336 = vld [vmem:[%s1 + $0x8] sm:$0xf]
      %v337 = vld [vmem:[%s1 + $0xc] sm:$0xf]
      %v338 = vld [vmem:[%s1 + $0x10] sm:$0xf]
      %v339 = vld [vmem:[%s1 + $0x14] sm:$0xf]
      %v340 = vld [vmem:[%s1 + $0x18] sm:$0xf]
      %v341 = vld [vmem:[%s1 + $0x1c] sm:$0xf]
      %343 = vset.pattern.permute.xlu0 0
      %344 = vperm.xlu0 %343, %v281
      %v345 = vpop.permute.xlu0 %344
      %348 = vset.pattern.permute.xlu0 0
      %349 = vperm.xlu0 %348, %v282
      %v350 = vpop.permute.xlu0 %349
      %353 = vset.pattern.permute.xlu0 0
      %354 = vperm.xlu0 %353, %v283
      %v355 = vpop.permute.xlu0 %354
      %358 = vset.pattern.permute.xlu0 0
      %359 = vperm.xlu0 %358, %v284
      %v360 = vpop.permute.xlu0 %359
      %363 = vset.pattern.permute.xlu0 0
      %364 = vperm.xlu0 %363, %v285
      %v365 = vpop.permute.xlu0 %364
      %368 = vset.pattern.permute.xlu0 0
      %369 = vperm.xlu0 %368, %v286
      %v370 = vpop.permute.xlu0 %369
      %373 = vset.pattern.permute.xlu0 0
      %374 = vperm.xlu0 %373, %v287
      %v375 = vpop.permute.xlu0 %374
      %378 = vset.pattern.permute.xlu0 0
      %379 = vperm.xlu0 %378, %v288
      %v380 = vpop.permute.xlu0 %379
      %v390 = vunpack.c.l.b16 %v334
      %v391 = vunpack.c.l.b16 %v335
      %v392 = vunpack.c.l.b16 %v336
      %v393 = vunpack.c.l.b16 %v337
      %v394 = vunpack.c.l.b16 %v338
      %v395 = vunpack.c.l.b16 %v339
      %v396 = vunpack.c.l.b16 %v340
      %v397 = vunpack.c.l.b16 %v341
      %v398 = vpack.c.b16 %v391, %v390
      %v399 = vpack.c.b16 %v393, %v392
      %v400 = vpack.c.b16 %v395, %v394
      %v401 = vpack.c.b16 %v397, %v396
      %v434 = vunpack.c.l.b16 %v302
      %v435 = vunpack.c.l.b16 %v303
      %v436 = vunpack.c.l.b16 %v304
      %v437 = vunpack.c.l.b16 %v305
      %v438 = vunpack.c.l.b16 %v306
      %v439 = vunpack.c.l.b16 %v307
      %v440 = vunpack.c.l.b16 %v308
      %v441 = vunpack.c.l.b16 %v309
      %v442 = vunpack.c.l.b16 %v310
      %v443 = vunpack.c.l.b16 %v311
      %v444 = vunpack.c.l.b16 %v312
      %v445 = vunpack.c.l.b16 %v313
      %v446 = vunpack.c.l.b16 %v314
      %v447 = vunpack.c.l.b16 %v315
      %v448 = vunpack.c.l.b16 %v316
      %v449 = vunpack.c.l.b16 %v317
      %v450 = vunpack.c.l.b16 %v318
      %v451 = vunpack.c.l.b16 %v319
      %v452 = vunpack.c.l.b16 %v320
      %v453 = vunpack.c.l.b16 %v321
      %v454 = vunpack.c.l.b16 %v322
      %v455 = vunpack.c.l.b16 %v323
      %v456 = vunpack.c.l.b16 %v324
      %v457 = vunpack.c.l.b16 %v325
      %v458 = vunpack.c.l.b16 %v326
      %v459 = vunpack.c.l.b16 %v327
      %v460 = vunpack.c.l.b16 %v328
      %v461 = vunpack.c.l.b16 %v329
      %v462 = vunpack.c.l.b16 %v330
      %v463 = vunpack.c.l.b16 %v331
      %v464 = vunpack.c.l.b16 %v332
      %v465 = vunpack.c.l.b16 %v333
      %v466 = vpack.c.b16 %v435, %v434
      %v467 = vpack.c.b16 %v437, %v436
      %v468 = vpack.c.b16 %v439, %v438
      %v469 = vpack.c.b16 %v441, %v440
      %v470 = vpack.c.b16 %v443, %v442
      %v471 = vpack.c.b16 %v445, %v444
      %v472 = vpack.c.b16 %v447, %v446
      %v473 = vpack.c.b16 %v449, %v448
      %v474 = vpack.c.b16 %v451, %v450
      %v475 = vpack.c.b16 %v453, %v452
      %v476 = vpack.c.b16 %v455, %v454
      %v477 = vpack.c.b16 %v457, %v456
      %v478 = vpack.c.b16 %v459, %v458
      %v479 = vpack.c.b16 %v461, %v460
      %v480 = vpack.c.b16 %v463, %v462
      %v481 = vpack.c.b16 %v465, %v464
      %vm482 = vcmask 523264
      %v484 = vsel %vm482, %v398, 0
      %v487 = vsel %vm482, %v399, 0
      %v490 = vsel %vm482, %v400, 0
      %v493 = vsel %vm482, %v401, 0
      %v496 = vsel %vm482, %v466, 0
      %v499 = vsel %vm482, %v467, 0
      %v502 = vsel %vm482, %v468, 0
      %v505 = vsel %vm482, %v469, 0
      %v508 = vsel %vm482, %v470, 0
      %v511 = vsel %vm482, %v471, 0
      %v514 = vsel %vm482, %v472, 0
      %v517 = vsel %vm482, %v473, 0
      %v520 = vsel %vm482, %v474, 0
      %v523 = vsel %vm482, %v475, 0
      %v526 = vsel %vm482, %v476, 0
      %v529 = vsel %vm482, %v477, 0
      %v532 = vsel %vm482, %v478, 0
      %v535 = vsel %vm482, %v479, 0
      %v538 = vsel %vm482, %v480, 0
      %v541 = vsel %vm482, %v481, 0
      %543 = vmatprep.subr.bf16.mxu0 0
      %544 = vmatpush1.bf16.xpose.msra.mxu0 %v517
      %545 = vmatprep.subr.bf16.mxu0 0
      %546 = vmatpush1.bf16.xpose.msra.mxu0 %v514
      %547 = vmatprep.subr.bf16.mxu0 0
      %548 = vmatpush1.bf16.xpose.msra.mxu0 %v511
      %549 = vmatprep.subr.bf16.mxu0 0
      %550 = vmatpush1.bf16.xpose.msra.mxu0 %v508
      %551 = vmatprep.subr.bf16.mxu0 0
      %552 = vmatpush1.bf16.xpose.msra.mxu0 %v505
      %553 = vmatprep.subr.bf16.mxu0 0
      %554 = vmatpush1.bf16.xpose.msra.mxu0 %v502
      %555 = vmatprep.subr.bf16.mxu0 0
      %556 = vmatpush1.bf16.xpose.msra.mxu0 %v499
      %557 = vmatprep.subr.bf16.mxu0 0
      %558 = vmatpush1.bf16.xpose.msra.mxu0 %v496
      %559 = vmatprep.subr.bf16.mxu0 0
      %560 = vmatpush2.bf16.xpose.msra.mxu0 %v541
      %561 = vmatprep.subr.bf16.mxu0 0
      %562 = vmatpush2.bf16.xpose.msra.mxu0 %v538
      %563 = vmatprep.subr.bf16.mxu0 0
      %564 = vmatpush2.bf16.xpose.msra.mxu0 %v535
      %565 = vmatprep.subr.bf16.mxu0 0
      %566 = vmatpush2.bf16.xpose.msra.mxu0 %v532
      %567 = vmatprep.subr.bf16.mxu0 0
      %568 = vmatpush2.bf16.xpose.msra.mxu0 %v529
      %569 = vmatprep.subr.bf16.mxu0 0
      %570 = vmatpush2.bf16.xpose.msra.mxu0 %v526
      %571 = vmatprep.subr.bf16.mxu0 0
      %572 = vmatpush2.bf16.xpose.msra.mxu0 %v523
      %573 = vmatprep.subr.bf16.mxu0 0
      %574 = vmatpush2.bf16.xpose.msra.mxu0 %v520
      %575 = vmatprep.mubr.bf16.mxu0 0
      %576 = vmatmul.mubr.bf16.gmra.mxu0 %v484
      %v577 = vpop.f32.mrf.mxu0
      %v578 = vadd.f32 %v345, %v577
      %v579 = vpop.f32.mrf.mxu0
      %v580 = vadd.f32 %v345, %v579
      %v581 = vpop.f32.mrf.mxu0
      %v582 = vadd.f32 %v350, %v581
      %v583 = vpop.f32.mrf.mxu0
      %v584 = vadd.f32 %v350, %v583
      %585 = vmatprep.mubr.bf16.mxu0 0
      %586 = vmatmul.mubr.bf16.gmra.mxu0 %v487
      %v587 = vpop.f32.mrf.mxu0
      %v588 = vadd.f32 %v355, %v587
      %v589 = vpop.f32.mrf.mxu0
      %v590 = vadd.f32 %v355, %v589
      %v591 = vpop.f32.mrf.mxu0
      %v592 = vadd.f32 %v360, %v591
      %v593 = vpop.f32.mrf.mxu0
      %v594 = vadd.f32 %v360, %v593
      %595 = vmatprep.mubr.bf16.mxu0 0
      %596 = vmatmul.mubr.bf16.gmra.mxu0 %v490
      %v597 = vpop.f32.mrf.mxu0
      %v598 = vadd.f32 %v365, %v597
      %v599 = vpop.f32.mrf.mxu0
      %v600 = vadd.f32 %v365, %v599
      %v601 = vpop.f32.mrf.mxu0
      %v602 = vadd.f32 %v370, %v601
      %v603 = vpop.f32.mrf.mxu0
      %v604 = vadd.f32 %v370, %v603
      %605 = vmatprep.mubr.bf16.mxu0 0
      %606 = vmatmul.mubr.bf16.gmra.mxu0 %v493
      %v607 = vpop.f32.mrf.mxu0
      %v608 = vadd.f32 %v375, %v607
      %v609 = vpop.f32.mrf.mxu0
      %v610 = vadd.f32 %v375, %v609
      %v611 = vpop.f32.mrf.mxu0
      %v612 = vadd.f32 %v380, %v611
      %v613 = vpop.f32.mrf.mxu0
      %v614 = vadd.f32 %v380, %v613
      %615 = vdwg.mxu0
      %v616 = vmax.f32 %v578, 0.0
      %v617 = vmax.f32 %v580, 0.0
      %v618 = vmax.f32 %v582, 0.0
      %v619 = vmax.f32 %v584, 0.0
      %v620 = vmax.f32 %v588, 0.0
      %v621 = vmax.f32 %v590, 0.0
      %v622 = vmax.f32 %v592, 0.0
      %v623 = vmax.f32 %v594, 0.0
      %v624 = vmax.f32 %v598, 0.0
      %v625 = vmax.f32 %v600, 0.0
      %v626 = vmax.f32 %v602, 0.0
      %v627 = vmax.f32 %v604, 0.0
      %v628 = vmax.f32 %v608, 0.0
      %v629 = vmax.f32 %v610, 0.0
      %v630 = vmax.f32 %v612, 0.0
      %v631 = vmax.f32 %v614, 0.0
      %v632 = vld [vmem:[%s2] sm:$0xf]
      %v633 = vld [vmem:[%s2 + $0x4] sm:$0xf]
      %v634 = vld [vmem:[%s2 + $0x8] sm:$0xf]
      %v635 = vld [vmem:[%s2 + $0xc] sm:$0xf]
      %v636 = vpack.c.bf16 %v618, %v616
      %v637 = vpack.c.bf16 %v619, %v617
      %v638 = vpack.c.bf16 %v622, %v620
      %v639 = vpack.c.bf16 %v623, %v621
      %v640 = vpack.c.bf16 %v626, %v624
      %v641 = vpack.c.bf16 %v627, %v625
      %v642 = vpack.c.bf16 %v630, %v628
      %v643 = vpack.c.bf16 %v631, %v629
      %645 = vset.pattern.permute.xlu0 0
      %646 = vperm.xlu0 %645, %v289
      %v647 = vpop.permute.xlu0 %646
      %650 = vset.pattern.permute.xlu0 0
      %651 = vperm.xlu0 %650, %v290
      %v652 = vpop.permute.xlu0 %651
      %655 = vset.pattern.permute.xlu0 0
      %656 = vperm.xlu0 %655, %v291
      %v657 = vpop.permute.xlu0 %656
      %660 = vset.pattern.permute.xlu0 0
      %661 = vperm.xlu0 %660, %v292
      %v662 = vpop.permute.xlu0 %661
      %v668 = vunpack.c.l.b16 %v632
      %v669 = vunpack.c.l.b16 %v633
      %v670 = vunpack.c.l.b16 %v634
      %v671 = vunpack.c.l.b16 %v635
      %v672 = vpack.c.b16 %v669, %v668
      %v673 = vpack.c.b16 %v671, %v670
      %v675 = vsel %vm482, %v672, 0
      %v678 = vsel %vm482, %v673, 0
      %680 = vmatprep.subr.bf16.mxu0 0
      %681 = vmatpush1.bf16.msra.mxu0 0
      %682 = vmatprep.subr.bf16.mxu0 0
      %683 = vmatpush1.bf16.msra.mxu0 0
      %684 = vmatprep.subr.bf16.mxu0 0
      %685 = vmatpush1.bf16.msra.mxu0 0
      %686 = vmatprep.subr.bf16.mxu0 0
      %687 = vmatpush1.bf16.msra.mxu0 0
      %688 = vmatprep.subr.bf16.mxu0 %v643
      %689 = vmatpush1.bf16.msra.mxu0 %v642
      %690 = vmatprep.subr.bf16.mxu0 %v641
      %691 = vmatpush1.bf16.msra.mxu0 %v640
      %692 = vmatprep.subr.bf16.mxu0 %v639
      %693 = vmatpush1.bf16.msra.mxu0 %v638
      %694 = vmatprep.subr.bf16.mxu0 %v637
      %695 = vmatpush1.bf16.msra.mxu0 %v636
      %696 = vmatprep.subr.bf16.mxu0 0
      %697 = vmatpush2.bf16.msra.mxu0 0
      %698 = vmatprep.subr.bf16.mxu0 0
      %699 = vmatpush2.bf16.msra.mxu0 0
      %700 = vmatprep.subr.bf16.mxu0 0
      %701 = vmatpush2.bf16.msra.mxu0 0
      %702 = vmatprep.subr.bf16.mxu0 0
      %703 = vmatpush2.bf16.msra.mxu0 0
      %704 = vmatprep.subr.bf16.mxu0 0
      %705 = vmatpush2.bf16.msra.mxu0 0
      %706 = vmatprep.subr.bf16.mxu0 0
      %707 = vmatpush2.bf16.msra.mxu0 0
      %708 = vmatprep.subr.bf16.mxu0 0
      %709 = vmatpush2.bf16.msra.mxu0 0
      %710 = vmatprep.subr.bf16.mxu0 0
      %711 = vmatpush2.bf16.msra.mxu0 0
      %712 = vmatprep.mubr.bf16.mxu0 0
      %713 = vmatmul.mubr.bf16.gmra.mxu0 %v675
      %v714 = vpop.f32.mrf.mxu0
      %v715 = vadd.f32 %v647, %v714
      %v716 = vpop.f32.mrf.mxu0
      %v717 = vadd.f32 %v647, %v716
      %v718 = vpop.f32.mrf.mxu0
      %v719 = vadd.f32 %v652, %v718
      %v720 = vpop.f32.mrf.mxu0
      %v721 = vadd.f32 %v652, %v720
      %722 = vmatprep.mubr.bf16.mxu0 0
      %723 = vmatmul.mubr.bf16.gmra.mxu0 %v678
      %v724 = vpop.f32.mrf.mxu0
      %v725 = vadd.f32 %v657, %v724
      %v726 = vpop.f32.mrf.mxu0
      %v727 = vadd.f32 %v657, %v726
      %v728 = vpop.f32.mrf.mxu0
      %v729 = vadd.f32 %v662, %v728
      %v730 = vpop.f32.mrf.mxu0
      %v731 = vadd.f32 %v662, %v730
      %732 = vdwg.mxu0
      %v733 = vmax.f32 %v715, 0.0
      %v734 = vmax.f32 %v717, 0.0
      %v735 = vmax.f32 %v719, 0.0
      %v736 = vmax.f32 %v721, 0.0
      %v737 = vmax.f32 %v725, 0.0
      %v738 = vmax.f32 %v727, 0.0
      %v739 = vmax.f32 %v729, 0.0
      %v740 = vmax.f32 %v731, 0.0
      %v741 = vld [vmem:[%s3] sm:$0xf]
      %v742 = vld [vmem:[%s3 + $0x4] sm:$0xf]
      %v743 = vld [vmem:[%s3 + $0x8] sm:$0xf]
      %v744 = vld [vmem:[%s3 + $0xc] sm:$0xf]
      %v745 = vpack.c.bf16 %v735, %v733
      %v746 = vpack.c.bf16 %v736, %v734
      %v747 = vpack.c.bf16 %v739, %v737
      %v748 = vpack.c.bf16 %v740, %v738
      %750 = vset.pattern.permute.xlu0 0
      %751 = vperm.xlu0 %750, %v293
      %v752 = vpop.permute.xlu0 %751
      %755 = vset.pattern.permute.xlu0 0
      %756 = vperm.xlu0 %755, %v294
      %v757 = vpop.permute.xlu0 %756
      %760 = vset.pattern.permute.xlu0 0
      %761 = vperm.xlu0 %760, %v295
      %v762 = vpop.permute.xlu0 %761
      %765 = vset.pattern.permute.xlu0 0
      %766 = vperm.xlu0 %765, %v296
      %v767 = vpop.permute.xlu0 %766
      %v773 = vunpack.c.l.b16 %v741
      %v774 = vunpack.c.l.b16 %v742
      %v775 = vunpack.c.l.b16 %v743
      %v776 = vunpack.c.l.b16 %v744
      %v777 = vpack.c.b16 %v774, %v773
      %v778 = vpack.c.b16 %v776, %v775
      %vm779 = vcmask 261120
      %v781 = vsel %vm779, %v777, 0
      %v784 = vsel %vm779, %v778, 0
      %786 = vmatprep.subr.bf16.mxu0 0
      %787 = vmatpush1.bf16.msra.mxu0 0
      %788 = vmatprep.subr.bf16.mxu0 0
      %789 = vmatpush1.bf16.msra.mxu0 0
      %790 = vmatprep.subr.bf16.mxu0 0
      %791 = vmatpush1.bf16.msra.mxu0 0
      %792 = vmatprep.subr.bf16.mxu0 0
      %793 = vmatpush1.bf16.msra.mxu0 0
      %794 = vmatprep.subr.bf16.mxu0 0
      %795 = vmatpush1.bf16.msra.mxu0 0
      %796 = vmatprep.subr.bf16.mxu0 0
      %797 = vmatpush1.bf16.msra.mxu0 0
      %798 = vmatprep.subr.bf16.mxu0 %v748
      %799 = vmatpush1.bf16.msra.mxu0 %v747
      %800 = vmatprep.subr.bf16.mxu0 %v746
      %801 = vmatpush1.bf16.msra.mxu0 %v745
      %802 = vmatprep.subr.bf16.mxu0 0
      %803 = vmatpush2.bf16.msra.mxu0 0
      %804 = vmatprep.subr.bf16.mxu0 0
      %805 = vmatpush2.bf16.msra.mxu0 0
      %806 = vmatprep.subr.bf16.mxu0 0
      %807 = vmatpush2.bf16.msra.mxu0 0
      %808 = vmatprep.subr.bf16.mxu0 0
      %809 = vmatpush2.bf16.msra.mxu0 0
      %810 = vmatprep.subr.bf16.mxu0 0
      %811 = vmatpush2.bf16.msra.mxu0 0
      %812 = vmatprep.subr.bf16.mxu0 0
      %813 = vmatpush2.bf16.msra.mxu0 0
      %814 = vmatprep.subr.bf16.mxu0 0
      %815 = vmatpush2.bf16.msra.mxu0 0
      %816 = vmatprep.subr.bf16.mxu0 0
      %817 = vmatpush2.bf16.msra.mxu0 0
      %818 = vmatprep.mubr.bf16.mxu0 0
      %819 = vmatmul.mubr.bf16.gmra.mxu0 %v781
      %v820 = vpop.f32.mrf.mxu0
      %v821 = vadd.f32 %v752, %v820
      %v822 = vpop.f32.mrf.mxu0
      %v823 = vadd.f32 %v752, %v822
      %v824 = vpop.f32.mrf.mxu0
      %v825 = vadd.f32 %v757, %v824
      %v826 = vpop.f32.mrf.mxu0
      %v827 = vadd.f32 %v757, %v826
      %828 = vmatprep.mubr.bf16.mxu0 0
      %829 = vmatmul.mubr.bf16.gmra.mxu0 %v784
      %v830 = vpop.f32.mrf.mxu0
      %v831 = vadd.f32 %v762, %v830
      %v832 = vpop.f32.mrf.mxu0
      %v833 = vadd.f32 %v762, %v832
      %v834 = vpop.f32.mrf.mxu0
      %v835 = vadd.f32 %v767, %v834
      %v836 = vpop.f32.mrf.mxu0
      %v837 = vadd.f32 %v767, %v836
      %838 = vdwg.mxu0
      %v839 = vmax.f32 %v821, 0.0
      %v840 = vmax.f32 %v823, 0.0
      %v841 = vmax.f32 %v825, 0.0
      %v842 = vmax.f32 %v827, 0.0
      %v843 = vmax.f32 %v831, 0.0
      %v844 = vmax.f32 %v833, 0.0
      %v845 = vmax.f32 %v835, 0.0
      %v846 = vmax.f32 %v837, 0.0
      %v847 = vld [vmem:[%s4] sm:$0xf]
      %v848 = vld [vmem:[%s4 + $0x4] sm:$0xf]
      %v849 = vld [vmem:[%s4 + $0x8] sm:$0xf]
      %v850 = vld [vmem:[%s4 + $0xc] sm:$0xf]
      %v851 = vpack.c.bf16 %v841, %v839
      %v852 = vpack.c.bf16 %v842, %v840
      %v853 = vpack.c.bf16 %v845, %v843
      %v854 = vpack.c.bf16 %v846, %v844
      %856 = vset.pattern.permute.xlu0 0
      %857 = vperm.xlu0 %856, %v297
      %v858 = vpop.permute.xlu0 %857
      %861 = vset.pattern.permute.xlu0 0
      %862 = vperm.xlu0 %861, %v298
      %v863 = vpop.permute.xlu0 %862
      %866 = vset.pattern.permute.xlu0 0
      %867 = vperm.xlu0 %866, %v299
      %v868 = vpop.permute.xlu0 %867
      %871 = vset.pattern.permute.xlu0 0
      %872 = vperm.xlu0 %871, %v300
      %v873 = vpop.permute.xlu0 %872
      %v879 = vunpack.c.l.b16 %v847
      %v880 = vunpack.c.l.b16 %v848
      %v881 = vunpack.c.l.b16 %v849
      %v882 = vunpack.c.l.b16 %v850
      %v883 = vpack.c.b16 %v880, %v879
      %v884 = vpack.c.b16 %v882, %v881
      %v886 = vsel %vm779, %v883, 0
      %v889 = vsel %vm779, %v884, 0
      %891 = vmatprep.subr.bf16.mxu0 0
      %892 = vmatpush1.bf16.msra.mxu0 0
      %893 = vmatprep.subr.bf16.mxu0 0
      %894 = vmatpush1.bf16.msra.mxu0 0
      %895 = vmatprep.subr.bf16.mxu0 0
      %896 = vmatpush1.bf16.msra.mxu0 0
      %897 = vmatprep.subr.bf16.mxu0 0
      %898 = vmatpush1.bf16.msra.mxu0 0
      %899 = vmatprep.subr.bf16.mxu0 0
      %900 = vmatpush1.bf16.msra.mxu0 0
      %901 = vmatprep.subr.bf16.mxu0 0
      %902 = vmatpush1.bf16.msra.mxu0 0
      %903 = vmatprep.subr.bf16.mxu0 %v854
      %904 = vmatpush1.bf16.msra.mxu0 %v853
      %905 = vmatprep.subr.bf16.mxu0 %v852
      %906 = vmatpush1.bf16.msra.mxu0 %v851
      %907 = vmatprep.subr.bf16.mxu0 0
      %908 = vmatpush2.bf16.msra.mxu0 0
      %909 = vmatprep.subr.bf16.mxu0 0
      %910 = vmatpush2.bf16.msra.mxu0 0
      %911 = vmatprep.subr.bf16.mxu0 0
      %912 = vmatpush2.bf16.msra.mxu0 0
      %913 = vmatprep.subr.bf16.mxu0 0
      %914 = vmatpush2.bf16.msra.mxu0 0
      %915 = vmatprep.subr.bf16.mxu0 0
      %916 = vmatpush2.bf16.msra.mxu0 0
      %917 = vmatprep.subr.bf16.mxu0 0
      %918 = vmatpush2.bf16.msra.mxu0 0
      %919 = vmatprep.subr.bf16.mxu0 0
      %920 = vmatpush2.bf16.msra.mxu0 0
      %921 = vmatprep.subr.bf16.mxu0 0
      %922 = vmatpush2.bf16.msra.mxu0 0
      %923 = vmatprep.mubr.bf16.mxu0 0
      %924 = vmatmul.mubr.bf16.gmra.mxu0 %v886
      %v925 = vpop.f32.mrf.mxu0
      %v926 = vadd.f32 %v858, %v925
      %v927 = vpop.f32.mrf.mxu0
      %v928 = vadd.f32 %v858, %v927
      %v929 = vpop.f32.mrf.mxu0
      %v930 = vadd.f32 %v863, %v929
      %v931 = vpop.f32.mrf.mxu0
      %v932 = vadd.f32 %v863, %v931
      %933 = vmatprep.mubr.bf16.mxu0 0
      %934 = vmatmul.mubr.bf16.gmra.mxu0 %v889
      %v935 = vpop.f32.mrf.mxu0
      %v936 = vadd.f32 %v868, %v935
      %v937 = vpop.f32.mrf.mxu0
      %v938 = vadd.f32 %v868, %v937
      %v939 = vpop.f32.mrf.mxu0
      %v940 = vadd.f32 %v873, %v939
      %v941 = vpop.f32.mrf.mxu0
      %v942 = vadd.f32 %v873, %v941
      %943 = vdwg.mxu0
      %v944 = vmax.f32 %v926, 0.0
      %v945 = vmax.f32 %v928, 0.0
      %v946 = vmax.f32 %v930, 0.0
      %v947 = vmax.f32 %v932, 0.0
      %v948 = vmax.f32 %v936, 0.0
      %v949 = vmax.f32 %v938, 0.0
      %v950 = vmax.f32 %v940, 0.0
      %v951 = vmax.f32 %v942, 0.0
      %v952 = vld [vmem:[%s5] sm:$0xff]
      %v953 = vld [vmem:[%s5 + $0x8] sm:$0xff]
      %v954 = vld [vmem:[%s5 + $0x10] sm:$0xff]
      %v955 = vld [vmem:[%s5 + $0x18] sm:$0xff]
      %957 = vset.pattern.permute.xlu0 0
      %958 = vperm.xlu0 %957, %v952
      %v959 = vpop.permute.xlu0 %958
      %962 = vset.pattern.permute.xlu0 0
      %963 = vperm.xlu0 %962, %v953
      %v964 = vpop.permute.xlu0 %963
      %967 = vset.pattern.permute.xlu0 0
      %968 = vperm.xlu0 %967, %v954
      %v969 = vpop.permute.xlu0 %968
      %972 = vset.pattern.permute.xlu0 0
      %973 = vperm.xlu0 %972, %v955
      %v974 = vpop.permute.xlu0 %973
      %v976 = vmul.f32 %v944, %v959
      %v977 = vmul.f32 %v945, %v959
      %v978 = vmul.f32 %v946, %v964
      %v979 = vmul.f32 %v947, %v964
      %v980 = vmul.f32 %v948, %v969
      %v981 = vmul.f32 %v949, %v969
      %v982 = vmul.f32 %v950, %v974
      %v983 = vmul.f32 %v951, %v974
      %v984 = vadd.f32 %v976, %v978
      %v985 = vadd.f32 %v984, %v980
      %v986 = vadd.f32 %v985, %v982
      %v987 = vrot.slane %v986, 4
      %v988 = vadd.f32 %v986, %v987
      %v989 = vrot.slane %v988, 2
      %v990 = vadd.f32 %v988, %v989
      %v991 = vrot.slane %v990, 1
      %v992 = vadd.f32 %v990, %v991
      %v993 = vadd.f32 %v977, %v979
      %v994 = vadd.f32 %v993, %v981
      %v995 = vadd.f32 %v994, %v983
      %v996 = vrot.slane %v995, 4
      %v997 = vadd.f32 %v995, %v996
      %v998 = vrot.slane %v997, 2
      %v999 = vadd.f32 %v997, %v998
      %v1000 = vrot.slane %v999, 1
      %v1001 = vadd.f32 %v999, %v1000
      %1003 = vset.pattern.permute.xlu0 0
      %1004 = vperm.xlu0 %1003, %v301
      %v1005 = vpop.permute.xlu0 %1004
      %v1007 = vadd.f32 %v992, %v1005
      %v1008 = vadd.f32 %v1001, %v1005
      %v1009 = vxor.u32 %v1007, 2147483648
      %v1010 = vxor.u32 %v1008, 2147483648
      %v1011 = vmul.f32 %v1009, 1.442695
      %v1012 = vpow.pop %v1011
      %v1013 = vmul.f32 %v1010, 1.442695
      %v1014 = vpow.pop %v1013
      %v1015 = vadd.f32 %v1012, 1.0
      %v1016 = vadd.f32 %v1014, 1.0
      %v1017 = vrcp.pop %v1015
      %v1018 = vmul.f32 1.0, %v1017
      %v1019 = vrcp.pop %v1016
      %v1020 = vmul.f32 1.0, %v1019
      %v1023 = vcombine.low %v1018, %v1020
      %v1025 = vunpack.c.l.s4 1966171168
      %v1026 = vunpack.c.0.s8 %v1025
      %v1027 = vlaneseq
      %v1028 = vshrl.u32 %v1027, 7
      %v1029 = vsub.s32 %v1026, %v1028
      %v1030 = vrot.slane %v1023, %v1029
      %v1032 = vunpack.c.l.s4 1966171168
      %v1033 = vunpack.c.0.s8 %v1032
      %v1034 = vlaneseq
      %v1035 = vshrl.u32 %v1034, 7
      %v1036 = vsub.s32 %v1033, %v1035
      %v1037 = vrot.slane %v1030, %v1036
      %v1039 = vlaneseq
      %vm1040 = vcmp.ge.s32.totalorder %v1039, 0
      %vm1041 = vcmp.lt.s32.totalorder %v1039, 256
      %vm1042 = vmand %vm1040, %vm1041
      %1043 = vst.msk [vmem:[%s278] sm:$0x3] %vm1042, %v1037
      %s1044 = smul.u32 2, %s18
      %p1045 = scmp.lt.s32.totalorder %s1044, 3
      %s1046 = scalar_select %p1045, %s1044, 3
      %s1047 = scalar_lea.vmem %s7, %s1046
      // Predicated region
      $region49: #{link_predictor_forward.1} parent=47 // pred_check
        %p1048 = pneg %p188
      $region50: #{link_predictor_forward.1} parent=47 // pred_check_branch
        %1050 = sbr.rel (%p1048) target = $region52
      $region51: #{link_predictor_forward.1} parent=47 // pred_region
        %s1051 = smul.u32 2, %s18
      $region52: #{link_predictor_forward.1} parent=47 // pred_fallthru
        _
    $region48: #{link_predictor_forward.1} parent=5 // pred_fallthru
      _
    %p1052 = scmp.le.s32.totalorder 2, %s13
    // Predicated region
    $region53: #{link_predictor_forward.1} parent=5 // pred_check
      %p1053 = pneg %p1052
    $region54: #{link_predictor_forward.1} parent=5 // pred_check_branch
      %1055 = sbr.rel (%p1053) target = $region56
    $region55: #{link_predictor_forward.1} parent=5 // pred_region
      %s1056 = ssub.s32 %s13, 2
      // Predicated region
      $region57: #{link_predictor_forward.1} parent=55 // pred_check
        %p1057 = pneg %p194
      $region58: #{link_predictor_forward.1} parent=55 // pred_check_branch
        %1059 = sbr.rel (%p1057) target = $region60
      $region59: #{link_predictor_forward.1} parent=55 // pred_region
        %s1060 = smul.u32 2, %s19
        %p1061 = scmp.lt.s32.totalorder %s1060, 3
        %s1062 = scalar_select %p1061, %s1060, 3
        %s1063 = scalar_lea.vmem %s7, %s1062
      $region60: #{link_predictor_forward.1} parent=55 // pred_fallthru
        _
    $region56: #{link_predictor_forward.1} parent=5 // pred_fallthru
      _
  $region6: #{link_predictor_forward.1} parent=0 // loop_footer
    %s17 = sadd.s32 1, %s13
  $region7: #{link_predictor_forward.1} parent=0 // loop_footer_branch
    %12 = sbr.rel target = $region3
  $region8: #{link_predictor_forward.1} parent=0 // loop_exit
    _

</llo_original>
